<compile_context>
chip_gen: v5e
topology: v5e:2x2
jax: 0.10.0
libtpu: 0.0.40
codegen_flags: <defaults>
</compile_context>

<pallas_src>
import jax
import jax.numpy as jnp
from jax.experimental import pallas as pl
from jax.experimental.pallas import tpu as pltpu

_LANES = 128
_ACC_ROWS = 128                        # 16 independent f32 accumulator vregs
_MAX_TILE_ROWS = 8192                  # (8192, 128) f32 = 4 MiB per pipeline buffer
_NUM_CORE_SPLITS = 2                   # leading "parallel" axis -> both TCs on v7x
_VMEM_LIMIT_BYTES = 48 * 1024 * 1024   # covers 16 MiB double-buffered inputs + slack
_FAST_PATH_MAX_ELEMS = 1024 * _LANES   # below this, fused XLA mean is faster


def _round_up(x: int, m: int) -> int:
    return ((x + m - 1) // m) * m


def _make_mse_kernel(tile_rows: int, steps_per_core: int, num_splits: int,
                     total_rows: int):
    """Build a kernel closed over static tiling parameters."""
    full_blocks = total_rows // tile_rows                      # blocks needing no mask
    needs_mask = (num_splits * steps_per_core * tile_rows) != total_rows

    def kernel(x_ref, t_ref, o_ref):
        c = pl.program_id(0)      # core-split axis ("parallel")
        i = pl.program_id(1)      # row-step axis   ("arbitrary" reduction)

        @pl.when(i == 0)
        def _():
            o_ref[...] = jnp.zeros_like(o_ref)

        d = x_ref[...].astype(jnp.float32) - t_ref[...].astype(jnp.float32)
        sq = d * d

        def accumulate(vals):
            # (tile_rows, 128) -> (tile_rows/_ACC_ROWS, _ACC_ROWS, 128); the
            # leading-axis sum is plain VPU adds into 16 independent vregs of
            # the resident accumulator (no cross-lane work in the hot loop).
            o_ref[...] += jnp.sum(
                vals.reshape(tile_rows // _ACC_ROWS, _ACC_ROWS, _LANES), axis=0
            )

        if needs_mask:
            blk = c * steps_per_core + i   # logical (pre-clamp) block index

            @pl.when(blk < full_blocks)
            def _():
                accumulate(sq)

            @pl.when(blk >= full_blocks)
            def _():
                # Partial edge block, or a clamped duplicate block past the
                # end of the array: rows at/after `total_rows` hold
                # unspecified data, so select them to zero (NaN-safe) before
                # accumulating.
                row_ids = blk * tile_rows + jax.lax.broadcasted_iota(
                    jnp.int32, (tile_rows, _LANES), 0
                )
                accumulate(jnp.where(row_ids < total_rows, sq, 0.0))
        else:
            accumulate(sq)

    return kernel


def content_mse(x: jax.Array, target: jax.Array, *, force_pallas: bool = False):
    """Scalar MSE loss between x and target (same shape), matching F.mse_loss."""
    assert x.shape == target.shape, "input/target shape mismatch"
    n_elems = x.size

    # Small-input fast path: a fused XLA elementwise+reduce beats the
    # pallas_call fixed cost for tiny tensors.
    if not force_pallas and n_elems <= _FAST_PATH_MAX_ELEMS:
        d = x.astype(jnp.float32) - target.astype(jnp.float32)
        return jnp.mean(d * d)

    xf = x.reshape(-1)
    tf = target.reshape(-1)

    # Rare ragged-lane fallback: pad to a multiple of 128 lanes.  Padded
    # entries are zero in both arrays, so they contribute exactly 0.
    rem = n_elems % _LANES
    if rem:
        pad = _LANES - rem
        xf = jnp.pad(xf, (0, pad))
        tf = jnp.pad(tf, (0, pad))

    rows = xf.size // _LANES
    x2 = xf.reshape(rows, _LANES)
    t2 = tf.reshape(rows, _LANES)

    # Tile rows: as large as possible (4 MiB/input/step streaming), multiple of
    # the accumulator height (also satisfies 16/32-row packing for narrow
    # dtypes); clamp for small inputs.
    tile_rows = min(_MAX_TILE_ROWS, _round_up(rows, _ACC_ROWS))
    n_blocks = pl.cdiv(rows, tile_rows)
    num_splits = min(_NUM_CORE_SPLITS, n_blocks)
    steps_per_core = pl.cdiv(n_blocks, num_splits)
    last_block = n_blocks - 1

    def in_index(c, i):
        # Clamp so duplicate steps (when blocks don't split evenly across
        # cores) re-read the last valid block; the kernel masks them to zero.
        return (jnp.minimum(c * steps_per_core + i, last_block), 0)

    kernel = _make_mse_kernel(tile_rows, steps_per_core, num_splits, rows)

    partials = pl.pallas_call(
        kernel,
        out_shape=jax.ShapeDtypeStruct((num_splits * _ACC_ROWS, _LANES),
                                       jnp.float32),
        grid_spec=pltpu.PrefetchScalarGridSpec(
            num_scalar_prefetch=0,
            grid=(num_splits, steps_per_core),
            in_specs=[
                pl.BlockSpec((tile_rows, _LANES), in_index),
                pl.BlockSpec((tile_rows, _LANES), in_index),
            ],
            out_specs=pl.BlockSpec((_ACC_ROWS, _LANES), lambda c, i: (c, 0)),
        ),
        compiler_params=pltpu.CompilerParams(
            dimension_semantics=("parallel", "arbitrary"),
            vmem_limit_bytes=_VMEM_LIMIT_BYTES,
        ),
        cost_estimate=pl.CostEstimate(
            flops=3 * n_elems,
            transcendentals=0,
            bytes_accessed=x2.nbytes + t2.nbytes
            + num_splits * _ACC_ROWS * _LANES * 4,
        ),
    )(x2, t2)

    # One cross-lane reduce over the tiny per-core partials + the mean divide,
    # done once outside the streaming loop.
    return (jnp.sum(partials) / jnp.float32(n_elems)).astype(jnp.float32)


class ContentMSEPallas:
    """Mirrors the PyTorch ContentMSE module API (forward pass only)."""

    def __init__(self):
        self.target = None

    def set_target(self, target):
        self.target = jax.lax.stop_gradient(target)  # == target.detach()

    def __call__(self, x):
        return content_mse(x, self.target)


if __name__ == "__main__":
    key = jax.random.PRNGKey(0)
    k1, k2 = jax.random.split(key)

    # Primary example: small NCHW-style feature maps (batch=2, channels=4, 16x16).
    x = jax.random.normal(k1, (2, 4, 16, 16), dtype=jnp.float32)
    target = jax.random.normal(k2, (2, 4, 16, 16), dtype=jnp.float32)

    ref = jnp.mean((x - target) ** 2)

    # Force the Pallas path for the primary example so the kernel itself is
    # exercised (the module default would use the small-input fast path here).
    loss = jax.block_until_ready(content_mse(x, target, force_pallas=True))
    assert jnp.allclose(loss, ref, rtol=1e-5, atol=1e-6), (loss, ref)

    # Module API (default path -> fused fast path for this tiny input) agrees.
    mod = ContentMSEPallas()
    mod.set_target(target)
    loss_mod = jax.block_until_ready(mod(x))
    assert jnp.allclose(loss_mod, ref, rtol=1e-5, atol=1e-6), (loss_mod, ref)

    # Secondary checks exercising the interesting kernel paths:
    #   (2,3,5,7)     ragged lanes  -> pad fallback + in-kernel edge mask
    #   (9000,128)    two blocks    -> two-core split + partial last block
    #   (16500,128)   three blocks  -> multi-step accumulation + clamped
    #                                  duplicate block on core 1
    #   (4,333,128)   bf16 input    -> narrow dtype in HBM, f32 accumulation
    checks = [
        ((2, 3, 5, 7), jnp.float32, 1e-5),
        ((9000, 128), jnp.float32, 1e-4),
        ((16500, 128), jnp.float32, 1e-4),
        ((4, 333, 128), jnp.bfloat16, 2e-2),
    ]
    for idx, (shape, dt, tol) in enumerate(checks):
        ka, kb = jax.random.split(jax.random.PRNGKey(idx + 1))
        xa = jax.random.normal(ka, shape, dtype=dt)
        ta = jax.random.normal(kb, shape, dtype=dt)
        got = jax.block_until_ready(content_mse(xa, ta, force_pallas=True))
        want = jnp.mean((xa.astype(jnp.float32) - ta.astype(jnp.float32)) ** 2)
        assert jnp.allclose(got, want, rtol=tol, atol=tol), (shape, got, want)

    print("KERNEL_OK")
</pallas_src>

<mosaic_0001>
module attributes {stable_mosaic.version = 11 : i64} {
  func.func @kernel(%arg0: i32, %arg1: i32, %arg2: memref<128x128xf32, #tpu.memory_space<vmem>>, %arg3: memref<128x128xf32, #tpu.memory_space<vmem>>, %arg4: memref<128x128xf32, #tpu.memory_space<vmem>>) attributes {dimension_semantics = [#tpu.dimension_semantics<parallel>, #tpu.dimension_semantics<arbitrary>], iteration_bounds = array<i64: 1, 1>, scalar_prefetch = 0 : i64, scratch_operands = 0 : i64, tpu.core_type = #tpu.core_type<tc>, window_params = [{transform_indices = @transform_0, window_bounds = array<i64: 128, 128>}, {transform_indices = @transform_1, window_bounds = array<i64: 128, 128>}, {transform_indices = @transform_2, window_bounds = array<i64: 128, 128>}]} {
    %c0_i32 = arith.constant 0 : i32
    %0 = arith.cmpi eq, %arg1, %c0_i32 : i32
    %1 = arith.extui %0 : i1 to i32
    %c0_i32_0 = arith.constant 0 : i32
    %2 = arith.cmpi ne, %1, %c0_i32_0 : i32
    scf.if %2 {
      %cst = arith.constant 0.000000e+00 : f32
      %15 = vector.broadcast %cst : f32 to vector<128x128xf32>
      %c0_8 = arith.constant 0 : index
      %c0_9 = arith.constant 0 : index
      %16 = vector.load %arg4[%c0_8, %c0_9] : memref<128x128xf32, #tpu.memory_space<vmem>>, vector<128x128xf32>
      tpu.vector_store %arg4[%c0_8, %c0_9], %15 {strides = array<i32>} : memref<128x128xf32, #tpu.memory_space<vmem>>, vector<128x128xf32>,
    } else {
    }
    %c0 = arith.constant 0 : index
    %c0_1 = arith.constant 0 : index
    %3 = vector.load %arg2[%c0, %c0_1] : memref<128x128xf32, #tpu.memory_space<vmem>>, vector<128x128xf32>
    %c0_2 = arith.constant 0 : index
    %c0_3 = arith.constant 0 : index
    %4 = vector.load %arg3[%c0_2, %c0_3] : memref<128x128xf32, #tpu.memory_space<vmem>>, vector<128x128xf32>
    %5 = arith.subf %3, %4 : vector<128x128xf32>
    %6 = arith.mulf %5, %5 : vector<128x128xf32>
    %c1_i32 = arith.constant 1 : i32
    %7 = arith.muli %arg0, %c1_i32 : i32
    %8 = arith.addi %7, %arg1 : i32
    %c0_i32_4 = arith.constant 0 : i32
    %9 = arith.cmpi slt, %8, %c0_i32_4 : i32
    %10 = arith.extui %9 : i1 to i32
    %c0_i32_5 = arith.constant 0 : i32
    %11 = arith.cmpi ne, %10, %c0_i32_5 : i32
    scf.if %11 {
      %c0_8 = arith.constant 0 : index
      %c0_9 = arith.constant 0 : index
      %15 = vector.load %arg4[%c0_8, %c0_9] : memref<128x128xf32, #tpu.memory_space<vmem>>, vector<128x128xf32>
      %16 = vector.shape_cast %6 : vector<128x128xf32> to vector<1x128x128xf32>
      %cst = arith.constant dense<0.000000e+00> : vector<128x128xf32>
      %17 = vector.multi_reduction <add>, %16, %cst [0] : vector<1x128x128xf32> to vector<128x128xf32>
      %18 = arith.addf %15, %17 : vector<128x128xf32>
      %c0_10 = arith.constant 0 : index
      %c0_11 = arith.constant 0 : index
      %19 = vector.load %arg4[%c0_10, %c0_11] : memref<128x128xf32, #tpu.memory_space<vmem>>, vector<128x128xf32>
      tpu.vector_store %arg4[%c0_10, %c0_11], %18 {strides = array<i32>} : memref<128x128xf32, #tpu.memory_space<vmem>>, vector<128x128xf32>,
    } else {
    }
    %c0_i32_6 = arith.constant 0 : i32
    %12 = arith.cmpi sge, %8, %c0_i32_6 : i32
    %13 = arith.extui %12 : i1 to i32
    %c0_i32_7 = arith.constant 0 : i32
    %14 = arith.cmpi ne, %13, %c0_i32_7 : i32
    scf.if %14 {
      %c128_i32 = arith.constant 128 : i32
      %15 = arith.muli %8, %c128_i32 : i32
      %16 = tpu.iota {dimensions = array<i32: 0>} : vector<128x128xi32>
      %17 = vector.broadcast %15 : i32 to vector<128x128xi32>
      %18 = arith.addi %17, %16 : vector<128x128xi32>
      %c16_i32 = arith.constant 16 : i32
      %19 = vector.broadcast %c16_i32 : i32 to vector<128x128xi32>
      %20 = arith.cmpi slt, %18, %19 : vector<128x128xi32>
      %cst = arith.constant 0.000000e+00 : f32
      %21 = vector.broadcast %cst : f32 to vector<128x128xf32>
      %22 = arith.select %20, %6, %21 : vector<128x128xi1>, vector<128x128xf32>
      %c0_8 = arith.constant 0 : index
      %c0_9 = arith.constant 0 : index
      %23 = vector.load %arg4[%c0_8, %c0_9] : memref<128x128xf32, #tpu.memory_space<vmem>>, vector<128x128xf32>
      %24 = vector.shape_cast %22 : vector<128x128xf32> to vector<1x128x128xf32>
      %cst_10 = arith.constant dense<0.000000e+00> : vector<128x128xf32>
      %25 = vector.multi_reduction <add>, %24, %cst_10 [0] : vector<1x128x128xf32> to vector<128x128xf32>
      %26 = arith.addf %23, %25 : vector<128x128xf32>
      %c0_11 = arith.constant 0 : index
      %c0_12 = arith.constant 0 : index
      %27 = vector.load %arg4[%c0_11, %c0_12] : memref<128x128xf32, #tpu.memory_space<vmem>>, vector<128x128xf32>
      tpu.vector_store %arg4[%c0_11, %c0_12], %26 {strides = array<i32>} : memref<128x128xf32, #tpu.memory_space<vmem>>, vector<128x128xf32>,
    } else {
    }
    return
  }
  func.func @transform_0(%arg0: i32, %arg1: i32) -> (i32, i32) {
    %c1_i32 = arith.constant 1 : i32
    %0 = arith.muli %arg0, %c1_i32 : i32
    %1 = arith.addi %0, %arg1 : i32
    %c0_i32 = arith.constant 0 : i32
    %2 = arith.minsi %1, %c0_i32 : i32
    %c0_i32_0 = arith.constant 0 : i32
    %c0_i32_1 = arith.constant 0 : i32
    return %2, %c0_i32_0 : i32, i32
  }
  func.func @transform_1(%arg0: i32, %arg1: i32) -> (i32, i32) {
    %c1_i32 = arith.constant 1 : i32
    %0 = arith.muli %arg0, %c1_i32 : i32
    %1 = arith.addi %0, %arg1 : i32
    %c0_i32 = arith.constant 0 : i32
    %2 = arith.minsi %1, %c0_i32 : i32
    %c0_i32_0 = arith.constant 0 : i32
    %c0_i32_1 = arith.constant 0 : i32
    return %2, %c0_i32_0 : i32, i32
  }
  func.func @transform_2(%arg0: i32, %arg1: i32) -> (i32, i32) {
    %c0_i32 = arith.constant 0 : i32
    %c0_i32_0 = arith.constant 0 : i32
    return %arg0, %c0_i32 : i32, i32
  }
}

</mosaic_0001>

<llo_original>
// kernel: tpu_custom_call.1
$region0: #{tpu_custom_call.1}
  #allocation0 [shape = 'u32[]', space=smem, size = 0x4, offset = 0x4, fixed_abs, tag = 'smem constant byte address 0x4 - core index']
  #allocation1 [shape = 'u32[72,128]{1,0:T(1,128)}', space=vmem, size = 0x9000, scoped, tag = 'internal scratch']
  %s0 = inlined_call_operand.hbm [shape: f32[16,128], index: 0, kind: input, shape index: {}]
  %s1 = inlined_call_operand.hbm [shape: f32[16,128], index: 1, kind: input, shape index: {}]
  %s2 = inlined_call_operand.hbm [shape: f32[128,128], index: 2, kind: output, shape index: {}]
  %s3 = sld [smem:[#allocation0]]
  $region38: #{tpu_custom_call.1} parent=0
    _
  %s5 = ssub.s32 1, %s3
  %s6 = scalar_select 0, %s5, %s3
  $region1: #{tpu_custom_call.1} parent=0
    #allocation2 [shape = 'u8[65536]{0}', space=vmem, size = 0x10000, scoped, tag = 'input window, operand 0, single buffered']
    #allocation3 [shape = 's32[1]{0}', space=sflag, size = 0x4, scoped, tag = 'scoped memory for tpu_custom_call.1']
    #allocation4 [shape = 's32[1]{0}', space=sflag, size = 0x4, scoped, tag = 'scoped memory for tpu_custom_call.1']
    #allocation5 [shape = 'u8[65536]{0}', space=vmem, size = 0x10000, scoped, tag = 'input window, operand 1, single buffered']
    #allocation6 [shape = 's32[1]{0}', space=sflag, size = 0x4, scoped, tag = 'scoped memory for tpu_custom_call.1']
    #allocation7 [shape = 'u8[65536]{0}', space=vmem, size = 0x10000, scoped, tag = 'output window, operand 0, single buffered']
    %7 = vsyncpa [#allocation3], 0
    %8 = vsyncpa [#allocation6], 0
    %9 = vsyncpa [#allocation4], 0
    // Predicated region
    $region2: #{tpu_custom_call.1} parent=1 // pred_check
      _
    $region3: #{tpu_custom_call.1} parent=1 // pred_check_branch
      %11 = sbr.rel (0) target = $region5
    $region4: #{tpu_custom_call.1} parent=1 // pred_region
      %s12 = sadd.s32 0, 0
      %p13 = scmp.lt.s32.totalorder %s12, 0
      %s14 = scalar_select %p13, %s12, 0
      %s15 = smul.u32 16, %s14
      %s16 = ssub.s32 2, %s15
      %s17 = smul.u32 8, %s16
      %s18 = ssub.s32 128, %s17
      %s19 = sshll.u32 %s18, 4
      %20 = vsyncadd [#allocation3], %s19
      %p21 = scmp.ne.s32.totalorder 0, %s17
      %s22 = smul.addr %s15, 8
      %s23 = scalar_lea.hbm %s0, %s22
      %s24 = smul.u32 8, %s16
      %s25 = sshll.u32 %s23, 4
      %s26 = int_to_ptr.hbm [resolvable:$true] %s25
      %s27 = sshll.u32 [#allocation2], 4
      %s28 = int_to_ptr.vmem [resolvable:$true] %s27
      %s29 = sshll.u32 %s24, 4
      %33 = dma.hbm_to_vmem [thread:$0]  (%p21), %s26, %s29, %s28, [#allocation3], 128, 128, 8
    $region5: #{tpu_custom_call.1} parent=1 // pred_fallthru
      _
    // Predicated region
    $region6: #{tpu_custom_call.1} parent=1 // pred_check
      _
    $region7: #{tpu_custom_call.1} parent=1 // pred_check_branch
      %35 = sbr.rel (0) target = $region9
    $region8: #{tpu_custom_call.1} parent=1 // pred_region
      %s36 = sadd.s32 0, 0
      %p37 = scmp.lt.s32.totalorder %s36, 0
      %s38 = scalar_select %p37, %s36, 0
      %s39 = smul.u32 16, %s38
      %s40 = ssub.s32 2, %s39
      %s41 = smul.u32 8, %s40
      %s42 = ssub.s32 128, %s41
      %s43 = sshll.u32 %s42, 4
      %44 = vsyncadd [#allocation6], %s43
      %p45 = scmp.ne.s32.totalorder 0, %s41
      %s46 = smul.addr %s39, 8
      %s47 = scalar_lea.hbm %s1, %s46
      %s48 = smul.u32 8, %s40
      %s49 = sshll.u32 %s47, 4
      %s50 = int_to_ptr.hbm [resolvable:$true] %s49
      %s51 = sshll.u32 [#allocation5], 4
      %s52 = int_to_ptr.vmem [resolvable:$true] %s51
      %s53 = sshll.u32 %s48, 4
      %57 = dma.hbm_to_vmem [thread:$0]  (%p45), %s50, %s53, %s52, [#allocation6], 128, 128, 8
    $region9: #{tpu_custom_call.1} parent=1 // pred_fallthru
      _
    // Predicated region
    $region10: #{tpu_custom_call.1} parent=1 // pred_check
      _
    $region11: #{tpu_custom_call.1} parent=1 // pred_check_branch
      %59 = sbr.rel (0) target = $region13
    $region12: #{tpu_custom_call.1} parent=1 // pred_region
      %61 = dma.done [#allocation3], 2048
    $region13: #{tpu_custom_call.1} parent=1 // pred_fallthru
      _
    // Predicated region
    $region14: #{tpu_custom_call.1} parent=1 // pred_check
      _
    $region15: #{tpu_custom_call.1} parent=1 // pred_check_branch
      %63 = sbr.rel (0) target = $region17
    $region16: #{tpu_custom_call.1} parent=1 // pred_region
      %65 = dma.done [#allocation6], 2048
    $region17: #{tpu_custom_call.1} parent=1 // pred_fallthru
      _
    %s66 = sadd.s32 0, 0
    %p67 = scmp.lt.s32.totalorder %s66, 0
    %s68 = scalar_select %p67, %s66, 0
    %s69 = smul.u32 16, %s68
    %s70 = ssub.s32 2, %s69
    %s71 = smul.u32 8, %s70
    %s72 = sadd.s32 0, 0
    %p73 = scmp.lt.s32.totalorder %s72, 0
    %s74 = scalar_select %p73, %s72, 0
    %s75 = smul.u32 16, %s74
    %s76 = ssub.s32 2, %s75
    %s77 = smul.u32 8, %s76
    %p78 = scmp.eq.s32.totalorder 0, 0
    // Predicated region
    $region18: #{tpu_custom_call.1} parent=1 // pred_check
      %p79 = pneg %p78
    $region19: #{tpu_custom_call.1} parent=1 // pred_check_branch
      %81 = sbr.rel (%p79) target = $region21
    $region20: #{tpu_custom_call.1} parent=1 // pred_region
      %82 = vst [vmem:[#allocation7] sm:$0xff] 0.0
      %83 = vst [vmem:[#allocation7 + $0x8] sm:$0xff] 0.0
      %84 = vst [vmem:[#allocation7 + $0x10] sm:$0xff] 0.0
      %85 = vst [vmem:[#allocation7 + $0x18] sm:$0xff] 0.0
      %86 = vst [vmem:[#allocation7 + $0x20] sm:$0xff] 0.0
      %87 = vst [vmem:[#allocation7 + $0x28] sm:$0xff] 0.0
      %88 = vst [vmem:[#allocation7 + $0x30] sm:$0xff] 0.0
      %89 = vst [vmem:[#allocation7 + $0x38] sm:$0xff] 0.0
      %90 = vst [vmem:[#allocation7 + $0x40] sm:$0xff] 0.0
      %91 = vst [vmem:[#allocation7 + $0x48] sm:$0xff] 0.0
      %92 = vst [vmem:[#allocation7 + $0x50] sm:$0xff] 0.0
      %93 = vst [vmem:[#allocation7 + $0x58] sm:$0xff] 0.0
      %94 = vst [vmem:[#allocation7 + $0x60] sm:$0xff] 0.0
      %95 = vst [vmem:[#allocation7 + $0x68] sm:$0xff] 0.0
      %96 = vst [vmem:[#allocation7 + $0x70] sm:$0xff] 0.0
      %97 = vst [vmem:[#allocation7 + $0x78] sm:$0xff] 0.0
    $region21: #{tpu_custom_call.1} parent=1 // pred_fallthru
      _
    %v98 = vld [vmem:[#allocation2] sm:$0xff]
    %v99 = vld [vmem:[#allocation2 + $0x8] sm:$0xff]
    %v100 = vld [vmem:[#allocation2 + $0x10] sm:$0xff]
    %v101 = vld [vmem:[#allocation2 + $0x18] sm:$0xff]
    %v102 = vld [vmem:[#allocation2 + $0x20] sm:$0xff]
    %v103 = vld [vmem:[#allocation2 + $0x28] sm:$0xff]
    %v104 = vld [vmem:[#allocation2 + $0x30] sm:$0xff]
    %v105 = vld [vmem:[#allocation2 + $0x38] sm:$0xff]
    %v106 = vld [vmem:[#allocation2 + $0x40] sm:$0xff]
    %v107 = vld [vmem:[#allocation2 + $0x48] sm:$0xff]
    %v108 = vld [vmem:[#allocation2 + $0x50] sm:$0xff]
    %v109 = vld [vmem:[#allocation2 + $0x58] sm:$0xff]
    %v110 = vld [vmem:[#allocation2 + $0x60] sm:$0xff]
    %v111 = vld [vmem:[#allocation2 + $0x68] sm:$0xff]
    %v112 = vld [vmem:[#allocation2 + $0x70] sm:$0xff]
    %v113 = vld [vmem:[#allocation2 + $0x78] sm:$0xff]
    %v114 = vld [vmem:[#allocation5] sm:$0xff]
    %v115 = vld [vmem:[#allocation5 + $0x8] sm:$0xff]
    %v116 = vld [vmem:[#allocation5 + $0x10] sm:$0xff]
    %v117 = vld [vmem:[#allocation5 + $0x18] sm:$0xff]
    %v118 = vld [vmem:[#allocation5 + $0x20] sm:$0xff]
    %v119 = vld [vmem:[#allocation5 + $0x28] sm:$0xff]
    %v120 = vld [vmem:[#allocation5 + $0x30] sm:$0xff]
    %v121 = vld [vmem:[#allocation5 + $0x38] sm:$0xff]
    %v122 = vld [vmem:[#allocation5 + $0x40] sm:$0xff]
    %v123 = vld [vmem:[#allocation5 + $0x48] sm:$0xff]
    %v124 = vld [vmem:[#allocation5 + $0x50] sm:$0xff]
    %v125 = vld [vmem:[#allocation5 + $0x58] sm:$0xff]
    %v126 = vld [vmem:[#allocation5 + $0x60] sm:$0xff]
    %v127 = vld [vmem:[#allocation5 + $0x68] sm:$0xff]
    %v128 = vld [vmem:[#allocation5 + $0x70] sm:$0xff]
    %v129 = vld [vmem:[#allocation5 + $0x78] sm:$0xff]
    %v130 = vsub.f32 %v98, %v114
    %v131 = vsub.f32 %v99, %v115
    %v132 = vsub.f32 %v100, %v116
    %v133 = vsub.f32 %v101, %v117
    %v134 = vsub.f32 %v102, %v118
    %v135 = vsub.f32 %v103, %v119
    %v136 = vsub.f32 %v104, %v120
    %v137 = vsub.f32 %v105, %v121
    %v138 = vsub.f32 %v106, %v122
    %v139 = vsub.f32 %v107, %v123
    %v140 = vsub.f32 %v108, %v124
    %v141 = vsub.f32 %v109, %v125
    %v142 = vsub.f32 %v110, %v126
    %v143 = vsub.f32 %v111, %v127
    %v144 = vsub.f32 %v112, %v128
    %v145 = vsub.f32 %v113, %v129
    %v146 = vmul.f32 %v130, %v130
    %v147 = vmul.f32 %v131, %v131
    %v148 = vmul.f32 %v132, %v132
    %v149 = vmul.f32 %v133, %v133
    %v150 = vmul.f32 %v134, %v134
    %v151 = vmul.f32 %v135, %v135
    %v152 = vmul.f32 %v136, %v136
    %v153 = vmul.f32 %v137, %v137
    %v154 = vmul.f32 %v138, %v138
    %v155 = vmul.f32 %v139, %v139
    %v156 = vmul.f32 %v140, %v140
    %v157 = vmul.f32 %v141, %v141
    %v158 = vmul.f32 %v142, %v142
    %v159 = vmul.f32 %v143, %v143
    %v160 = vmul.f32 %v144, %v144
    %v161 = vmul.f32 %v145, %v145
    %s162 = sadd.s32 0, 0
    %p163 = scmp.lt.s32.totalorder %s162, 0
    // Predicated region
    $region22: #{tpu_custom_call.1} parent=1 // pred_check
      %p164 = pneg %p163
    $region23: #{tpu_custom_call.1} parent=1 // pred_check_branch
      %166 = sbr.rel (%p164) target = $region25
    $region24: #{tpu_custom_call.1} parent=1 // pred_region
      %v167 = vld [vmem:[#allocation7] sm:$0xff]
      %v168 = vld [vmem:[#allocation7 + $0x8] sm:$0xff]
      %v169 = vld [vmem:[#allocation7 + $0x10] sm:$0xff]
      %v170 = vld [vmem:[#allocation7 + $0x18] sm:$0xff]
      %v171 = vld [vmem:[#allocation7 + $0x20] sm:$0xff]
      %v172 = vld [vmem:[#allocation7 + $0x28] sm:$0xff]
      %v173 = vld [vmem:[#allocation7 + $0x30] sm:$0xff]
      %v174 = vld [vmem:[#allocation7 + $0x38] sm:$0xff]
      %v175 = vld [vmem:[#allocation7 + $0x40] sm:$0xff]
      %v176 = vld [vmem:[#allocation7 + $0x48] sm:$0xff]
      %v177 = vld [vmem:[#allocation7 + $0x50] sm:$0xff]
      %v178 = vld [vmem:[#allocation7 + $0x58] sm:$0xff]
      %v179 = vld [vmem:[#allocation7 + $0x60] sm:$0xff]
      %v180 = vld [vmem:[#allocation7 + $0x68] sm:$0xff]
      %v181 = vld [vmem:[#allocation7 + $0x70] sm:$0xff]
      %v182 = vld [vmem:[#allocation7 + $0x78] sm:$0xff]
      %v183 = vadd.f32 %v146, 0.0
      %v184 = vadd.f32 %v147, 0.0
      %v185 = vadd.f32 %v148, 0.0
      %v186 = vadd.f32 %v149, 0.0
      %v187 = vadd.f32 %v150, 0.0
      %v188 = vadd.f32 %v151, 0.0
      %v189 = vadd.f32 %v152, 0.0
      %v190 = vadd.f32 %v153, 0.0
      %v191 = vadd.f32 %v154, 0.0
      %v192 = vadd.f32 %v155, 0.0
      %v193 = vadd.f32 %v156, 0.0
      %v194 = vadd.f32 %v157, 0.0
      %v195 = vadd.f32 %v158, 0.0
      %v196 = vadd.f32 %v159, 0.0
      %v197 = vadd.f32 %v160, 0.0
      %v198 = vadd.f32 %v161, 0.0
      %v199 = vadd.f32 %v167, %v183
      %v200 = vadd.f32 %v168, %v184
      %v201 = vadd.f32 %v169, %v185
      %v202 = vadd.f32 %v170, %v186
      %v203 = vadd.f32 %v171, %v187
      %v204 = vadd.f32 %v172, %v188
      %v205 = vadd.f32 %v173, %v189
      %v206 = vadd.f32 %v174, %v190
      %v207 = vadd.f32 %v175, %v191
      %v208 = vadd.f32 %v176, %v192
      %v209 = vadd.f32 %v177, %v193
      %v210 = vadd.f32 %v178, %v194
      %v211 = vadd.f32 %v179, %v195
      %v212 = vadd.f32 %v180, %v196
      %v213 = vadd.f32 %v181, %v197
      %v214 = vadd.f32 %v182, %v198
      %215 = vst [vmem:[#allocation7] sm:$0xff] %v199
      %216 = vst [vmem:[#allocation7 + $0x8] sm:$0xff] %v200
      %217 = vst [vmem:[#allocation7 + $0x10] sm:$0xff] %v201
      %218 = vst [vmem:[#allocation7 + $0x18] sm:$0xff] %v202
      %219 = vst [vmem:[#allocation7 + $0x20] sm:$0xff] %v203
      %220 = vst [vmem:[#allocation7 + $0x28] sm:$0xff] %v204
      %221 = vst [vmem:[#allocation7 + $0x30] sm:$0xff] %v205
      %222 = vst [vmem:[#allocation7 + $0x38] sm:$0xff] %v206
      %223 = vst [vmem:[#allocation7 + $0x40] sm:$0xff] %v207
      %224 = vst [vmem:[#allocation7 + $0x48] sm:$0xff] %v208
      %225 = vst [vmem:[#allocation7 + $0x50] sm:$0xff] %v209
      %226 = vst [vmem:[#allocation7 + $0x58] sm:$0xff] %v210
      %227 = vst [vmem:[#allocation7 + $0x60] sm:$0xff] %v211
      %228 = vst [vmem:[#allocation7 + $0x68] sm:$0xff] %v212
      %229 = vst [vmem:[#allocation7 + $0x70] sm:$0xff] %v213
      %230 = vst [vmem:[#allocation7 + $0x78] sm:$0xff] %v214
    $region25: #{tpu_custom_call.1} parent=1 // pred_fallthru
      _
    %p231 = scmp.ge.s32.totalorder %s162, 0
    // Predicated region
    $region26: #{tpu_custom_call.1} parent=1 // pred_check
      %p232 = pneg %p231
    $region27: #{tpu_custom_call.1} parent=1 // pred_check_branch
      %234 = sbr.rel (%p232) target = $region29
    $region28: #{tpu_custom_call.1} parent=1 // pred_region
      %s235 = smul.u32 %s162, 128
      %v236 = vlaneseq
      %v237 = vshrl.u32 %v236, 7
      %v238 = vadd.s32 %v237, 8
      %v239 = vadd.s32 %v237, 16
      %v240 = vadd.s32 %v237, 24
      %v241 = vadd.s32 %v237, 32
      %v242 = vadd.s32 %v237, 40
      %v243 = vadd.s32 %v237, 48
      %v244 = vadd.s32 %v237, 56
      %v245 = vadd.s32 %v237, 64
      %v246 = vadd.s32 %v237, 72
      %v247 = vadd.s32 %v237, 80
      %v248 = vadd.s32 %v237, 88
      %v249 = vadd.s32 %v237, 96
      %v250 = vadd.s32 %v237, 104
      %v251 = vadd.s32 %v237, 112
      %v252 = vadd.s32 %v237, 120
      %v253 = vstv %s235
      %v254 = vadd.s32 %v253, %v237
      %v255 = vadd.s32 %v253, %v238
      %v256 = vadd.s32 %v253, %v239
      %v257 = vadd.s32 %v253, %v240
      %v258 = vadd.s32 %v253, %v241
      %v259 = vadd.s32 %v253, %v242
      %v260 = vadd.s32 %v253, %v243
      %v261 = vadd.s32 %v253, %v244
      %v262 = vadd.s32 %v253, %v245
      %v263 = vadd.s32 %v253, %v246
      %v264 = vadd.s32 %v253, %v247
      %v265 = vadd.s32 %v253, %v248
      %v266 = vadd.s32 %v253, %v249
      %v267 = vadd.s32 %v253, %v250
      %v268 = vadd.s32 %v253, %v251
      %v269 = vadd.s32 %v253, %v252
      %vm270 = vcmp.lt.s32.totalorder %v254, 16
      %vm271 = vcmp.lt.s32.totalorder %v255, 16
      %vm272 = vcmp.lt.s32.totalorder %v256, 16
      %vm273 = vcmp.lt.s32.totalorder %v257, 16
      %vm274 = vcmp.lt.s32.totalorder %v258, 16
      %vm275 = vcmp.lt.s32.totalorder %v259, 16
      %vm276 = vcmp.lt.s32.totalorder %v260, 16
      %vm277 = vcmp.lt.s32.totalorder %v261, 16
      %vm278 = vcmp.lt.s32.totalorder %v262, 16
      %vm279 = vcmp.lt.s32.totalorder %v263, 16
      %vm280 = vcmp.lt.s32.totalorder %v264, 16
      %vm281 = vcmp.lt.s32.totalorder %v265, 16
      %vm282 = vcmp.lt.s32.totalorder %v266, 16
      %vm283 = vcmp.lt.s32.totalorder %v267, 16
      %vm284 = vcmp.lt.s32.totalorder %v268, 16
      %vm285 = vcmp.lt.s32.totalorder %v269, 16
      %v286 = vsel %vm270, %v146, 0.0
      %v287 = vsel %vm271, %v147, 0.0
      %v288 = vsel %vm272, %v148, 0.0
      %v289 = vsel %vm273, %v149, 0.0
      %v290 = vsel %vm274, %v150, 0.0
      %v291 = vsel %vm275, %v151, 0.0
      %v292 = vsel %vm276, %v152, 0.0
      %v293 = vsel %vm277, %v153, 0.0
      %v294 = vsel %vm278, %v154, 0.0
      %v295 = vsel %vm279, %v155, 0.0
      %v296 = vsel %vm280, %v156, 0.0
      %v297 = vsel %vm281, %v157, 0.0
      %v298 = vsel %vm282, %v158, 0.0
      %v299 = vsel %vm283, %v159, 0.0
      %v300 = vsel %vm284, %v160, 0.0
      %v301 = vsel %vm285, %v161, 0.0
      %v302 = vld [vmem:[#allocation7] sm:$0xff]
      %v303 = vld [vmem:[#allocation7 + $0x8] sm:$0xff]
      %v304 = vld [vmem:[#allocation7 + $0x10] sm:$0xff]
      %v305 = vld [vmem:[#allocation7 + $0x18] sm:$0xff]
      %v306 = vld [vmem:[#allocation7 + $0x20] sm:$0xff]
      %v307 = vld [vmem:[#allocation7 + $0x28] sm:$0xff]
      %v308 = vld [vmem:[#allocation7 + $0x30] sm:$0xff]
      %v309 = vld [vmem:[#allocation7 + $0x38] sm:$0xff]
      %v310 = vld [vmem:[#allocation7 + $0x40] sm:$0xff]
      %v311 = vld [vmem:[#allocation7 + $0x48] sm:$0xff]
      %v312 = vld [vmem:[#allocation7 + $0x50] sm:$0xff]
      %v313 = vld [vmem:[#allocation7 + $0x58] sm:$0xff]
      %v314 = vld [vmem:[#allocation7 + $0x60] sm:$0xff]
      %v315 = vld [vmem:[#allocation7 + $0x68] sm:$0xff]
      %v316 = vld [vmem:[#allocation7 + $0x70] sm:$0xff]
      %v317 = vld [vmem:[#allocation7 + $0x78] sm:$0xff]
      %v318 = vadd.f32 %v286, 0.0
      %v319 = vadd.f32 %v287, 0.0
      %v320 = vadd.f32 %v288, 0.0
      %v321 = vadd.f32 %v289, 0.0
      %v322 = vadd.f32 %v290, 0.0
      %v323 = vadd.f32 %v291, 0.0
      %v324 = vadd.f32 %v292, 0.0
      %v325 = vadd.f32 %v293, 0.0
      %v326 = vadd.f32 %v294, 0.0
      %v327 = vadd.f32 %v295, 0.0
      %v328 = vadd.f32 %v296, 0.0
      %v329 = vadd.f32 %v297, 0.0
      %v330 = vadd.f32 %v298, 0.0
      %v331 = vadd.f32 %v299, 0.0
      %v332 = vadd.f32 %v300, 0.0
      %v333 = vadd.f32 %v301, 0.0
      %v334 = vadd.f32 %v302, %v318
      %v335 = vadd.f32 %v303, %v319
      %v336 = vadd.f32 %v304, %v320
      %v337 = vadd.f32 %v305, %v321
      %v338 = vadd.f32 %v306, %v322
      %v339 = vadd.f32 %v307, %v323
      %v340 = vadd.f32 %v308, %v324
      %v341 = vadd.f32 %v309, %v325
      %v342 = vadd.f32 %v310, %v326
      %v343 = vadd.f32 %v311, %v327
      %v344 = vadd.f32 %v312, %v328
      %v345 = vadd.f32 %v313, %v329
      %v346 = vadd.f32 %v314, %v330
      %v347 = vadd.f32 %v315, %v331
      %v348 = vadd.f32 %v316, %v332
      %v349 = vadd.f32 %v317, %v333
      %350 = vst [vmem:[#allocation7] sm:$0xff] %v334
      %351 = vst [vmem:[#allocation7 + $0x8] sm:$0xff] %v335
      %352 = vst [vmem:[#allocation7 + $0x10] sm:$0xff] %v336
      %353 = vst [vmem:[#allocation7 + $0x18] sm:$0xff] %v337
      %354 = vst [vmem:[#allocation7 + $0x20] sm:$0xff] %v338
      %355 = vst [vmem:[#allocation7 + $0x28] sm:$0xff] %v339
      %356 = vst [vmem:[#allocation7 + $0x30] sm:$0xff] %v340
      %357 = vst [vmem:[#allocation7 + $0x38] sm:$0xff] %v341
      %358 = vst [vmem:[#allocation7 + $0x40] sm:$0xff] %v342
      %359 = vst [vmem:[#allocation7 + $0x48] sm:$0xff] %v343
      %360 = vst [vmem:[#allocation7 + $0x50] sm:$0xff] %v344
      %361 = vst [vmem:[#allocation7 + $0x58] sm:$0xff] %v345
      %362 = vst [vmem:[#allocation7 + $0x60] sm:$0xff] %v346
      %363 = vst [vmem:[#allocation7 + $0x68] sm:$0xff] %v347
      %364 = vst [vmem:[#allocation7 + $0x70] sm:$0xff] %v348
      %365 = vst [vmem:[#allocation7 + $0x78] sm:$0xff] %v349
    $region29: #{tpu_custom_call.1} parent=1 // pred_fallthru
      _
    // Predicated region
    $region30: #{tpu_custom_call.1} parent=1 // pred_check
      _
    $region31: #{tpu_custom_call.1} parent=1 // pred_check_branch
      %367 = sbr.rel (0) target = $region33
    $region32: #{tpu_custom_call.1} parent=1 // pred_region
      %369 = vsyncadd [#allocation4], 0
      %s370 = sshll.u32 [#allocation7], 4
      %s371 = int_to_ptr.vmem [resolvable:$true] %s370
      %s372 = sshll.u32 %s2, 4
      %s373 = int_to_ptr.hbm [resolvable:$true] %s372
      %378 = dma.vmem_to_hbm [thread:$0]  %s371, 2048, %s373, [#allocation4], 128, 128, 8
    $region33: #{tpu_custom_call.1} parent=1 // pred_fallthru
      _
    // Predicated region
    $region34: #{tpu_custom_call.1} parent=1 // pred_check
      _
    $region35: #{tpu_custom_call.1} parent=1 // pred_check_branch
      %380 = sbr.rel (0) target = $region37
    $region36: #{tpu_custom_call.1} parent=1 // pred_region
      %382 = dma.done [#allocation4], 2048
    $region37: #{tpu_custom_call.1} parent=1 // pred_fallthru
      _
    %383 = vsyncpa [#allocation3], 1
    %384 = vsyncpa [#allocation6], 1
    %385 = vsyncpa [#allocation4], 1

</llo_original>
